<compile_context>
chip_gen: v5e
topology: v5e:2x2
jax: 0.10.0
libtpu: 0.0.40
codegen_flags: <defaults>
</compile_context>

<pallas_src>
import functools

import jax
import jax.numpy as jnp
from jax.experimental import pallas as pl
from jax.experimental.pallas import tpu as pltpu


def _vmem_limit_bytes():
    """Generation-aware scoped-VMEM budget (~60% of physical VMEM)."""
    try:
        info = pltpu.get_tpu_info()
        cap = getattr(info, "vmem_capacity_bytes", None) or (64 * 1024 * 1024)
    except Exception:
        cap = 64 * 1024 * 1024
    return int(min(cap * 0.6, 100 * 1024 * 1024))


_VMEM_LIMIT = _vmem_limit_bytes()


def _tile(dim, target, mult):
    """Largest tile <= target that divides `dim` and is a multiple of `mult`.

    Falls back to the full dim (always layout-legal: full-extent blocks are
    exempt from the (8,128) tiling rule)."""
    if dim <= target:
        return dim
    t = (target // mult) * mult
    while t >= mult:
        if dim % t == 0:
            return t
        t -= mult
    return dim


def _row_tile(M, target):
    """Row tile that keeps >= 2 grid steps when possible (v7x megacore)."""
    return _tile(M, min(target, max(M // 2, 8)), 8)


def _gelu(x):
    # TODO(synk): BERT uses exact erf-GELU; tanh approximation used here for
    # guaranteed Mosaic lowering.
    return jax.nn.gelu(x, approximate=True)


# ----------------------------------------------------------------------------
# Tiled dense: y = act(x @ w + b), grid (M/tm, N/tn, K/tk), f32 accumulator,
# bf16 MXU operands.
# ----------------------------------------------------------------------------

def _dense_kernel(x_ref, w_ref, b_ref, o_ref, acc_ref, *, activation):
    @pl.when(pl.program_id(2) == 0)
    def _():
        acc_ref[...] = jnp.zeros_like(acc_ref)

    acc_ref[...] += jnp.dot(x_ref[...].astype(jnp.bfloat16),
                            w_ref[...].astype(jnp.bfloat16),
                            preferred_element_type=jnp.float32)

    @pl.when(pl.program_id(2) == pl.num_programs(2) - 1)
    def _():
        y = acc_ref[...] + b_ref[...].astype(jnp.float32)
        if activation == "gelu":
            y = _gelu(y)
        o_ref[...] = y.astype(o_ref.dtype)


def dense(x, w, b, activation=None, out_dtype=jnp.float32):
    M, K = x.shape
    N = w.shape[1]
    tm = _tile(M, 512, 8)
    tn = _tile(N, 512, 128)
    tk = _tile(K, 512, 128)
    grid = (M // tm, N // tn, K // tk)
    kern = functools.partial(_dense_kernel, activation=activation)
    out_itemsize = jnp.dtype(out_dtype).itemsize
    return pl.pallas_call(
        kern,
        out_shape=jax.ShapeDtypeStruct((M, N), out_dtype),
        grid_spec=pltpu.PrefetchScalarGridSpec(
            num_scalar_prefetch=0,
            grid=grid,
            in_specs=[pl.BlockSpec((tm, tk), lambda i, j, k: (i, k)),
                      pl.BlockSpec((tk, tn), lambda i, j, k: (k, j)),
                      pl.BlockSpec((1, tn), lambda i, j, k: (0, j))],
            out_specs=pl.BlockSpec((tm, tn), lambda i, j, k: (i, j)),
            scratch_shapes=[pltpu.VMEM((tm, tn), jnp.float32)]),
        compiler_params=pltpu.CompilerParams(
            dimension_semantics=("parallel", "parallel", "arbitrary"),
            vmem_limit_bytes=_VMEM_LIMIT),
        cost_estimate=pl.CostEstimate(
            flops=2 * M * N * K,
            transcendentals=(M * N if activation == "gelu" else 0),
            bytes_accessed=(x.dtype.itemsize * M * K * (N // tn)      # x re-read per N tile
                            + w.dtype.itemsize * K * N * (M // tm)    # w re-read per M tile
                            + 4 * N * (M // tm)
                            + out_itemsize * M * N)),
    )(x, w, b.reshape(1, N))


# ----------------------------------------------------------------------------
# Fused FFN: out = gelu(x @ w1 + b1) @ w2 + b2, intermediate stays in VMEM.
# Falls back to two dense() calls when the resident weights + intermediate
# would not fit the VMEM budget (v7x / large models).
# ----------------------------------------------------------------------------

def _ffn_kernel(x_ref, w1_ref, b1_ref, w2_ref, b2_ref, o_ref):
    x = x_ref[...].astype(jnp.bfloat16)
    h = jnp.dot(x, w1_ref[...].astype(jnp.bfloat16),
                preferred_element_type=jnp.float32)
    h = _gelu(h + b1_ref[...].astype(jnp.float32))
    y = jnp.dot(h.astype(jnp.bfloat16), w2_ref[...].astype(jnp.bfloat16),
                preferred_element_type=jnp.float32)
    o_ref[...] = (y + b2_ref[...].astype(jnp.float32)).astype(o_ref.dtype)


def ffn(x, w1, b1, w2, b2):
    M, H = x.shape
    I = w1.shape[1]
    tm = _row_tile(M, 256)

    # VMEM footprint of the fused kernel (weights are double-buffered by the
    # default pipeline even though their index maps are constant).
    # TODO(synk): single-buffer the grid-invariant weight BlockSpecs
    # (pipeline_mode=pl.Buffered(1)) or tile I with an inner K-grid to keep
    # the fusion viable for larger models on v7x.
    fused_bytes = (2 * 2 * H * I * w1.dtype.itemsize      # w1 + w2, x2 buffers
                   + 2 * 2 * (I + H) * 4                  # biases, x2 buffers
                   + 2 * tm * H * (x.dtype.itemsize + 4)  # x in + f32 out, x2 buffers
                   + tm * I * 4)                          # intermediate
    if fused_bytes > (3 * _VMEM_LIMIT) // 4:
        h = dense(x, w1, b1, activation="gelu", out_dtype=jnp.bfloat16)
        return dense(h, w2, b2)

    grid = (M // tm,)
    return pl.pallas_call(
        _ffn_kernel,
        out_shape=jax.ShapeDtypeStruct((M, H), jnp.float32),
        grid_spec=pltpu.PrefetchScalarGridSpec(
            num_scalar_prefetch=0,
            grid=grid,
            in_specs=[pl.BlockSpec((tm, H), lambda i: (i, 0)),
                      pl.BlockSpec((H, I), lambda i: (0, 0)),
                      pl.BlockSpec((1, I), lambda i: (0, 0)),
                      pl.BlockSpec((I, H), lambda i: (0, 0)),
                      pl.BlockSpec((1, H), lambda i: (0, 0))],
            out_specs=pl.BlockSpec((tm, H), lambda i: (i, 0))),
        compiler_params=pltpu.CompilerParams(
            dimension_semantics=("parallel",),
            vmem_limit_bytes=_VMEM_LIMIT),
        cost_estimate=pl.CostEstimate(
            flops=4 * M * H * I,
            transcendentals=M * I,
            bytes_accessed=(x.dtype.itemsize * M * H
                            + 2 * H * I * w1.dtype.itemsize
                            + 4 * (I + H)
                            + 4 * M * H)),
    )(x, w1, b1.reshape(1, I), w2, b2.reshape(1, H))


# ----------------------------------------------------------------------------
# Fused (optional residual add) + LayerNorm, row-tiled, f32 math.
# ----------------------------------------------------------------------------

def _ln_kernel(*refs, eps, residual):
    if residual:
        x_ref, y_ref, g_ref, b_ref, o_ref = refs
        x = x_ref[...].astype(jnp.float32) + y_ref[...].astype(jnp.float32)
    else:
        x_ref, g_ref, b_ref, o_ref = refs
        x = x_ref[...].astype(jnp.float32)
    mu = jnp.mean(x, axis=-1, keepdims=True)
    xc = x - mu
    var = jnp.mean(xc * xc, axis=-1, keepdims=True)
    y = xc * jax.lax.rsqrt(var + eps)
    o_ref[...] = (y * g_ref[...] + b_ref[...]).astype(o_ref.dtype)


def _layer_norm_impl(x, gamma, beta, eps, residual_in=None):
    M, H = x.shape
    tm = _row_tile(M, 1024)
    grid = (M // tm,)
    residual = residual_in is not None
    kern = functools.partial(_ln_kernel, eps=eps, residual=residual)
    row_spec = pl.BlockSpec((tm, H), lambda i: (i, 0))
    vec_spec = pl.BlockSpec((1, H), lambda i: (0, 0))
    in_specs = [row_spec] + ([row_spec] if residual else []) + [vec_spec, vec_spec]
    args = ([x] + ([residual_in] if residual else [])
            + [gamma.reshape(1, H), beta.reshape(1, H)])
    return pl.pallas_call(
        kern,
        out_shape=jax.ShapeDtypeStruct((M, H), jnp.float32),
        grid_spec=pltpu.PrefetchScalarGridSpec(
            num_scalar_prefetch=0,
            grid=grid,
            in_specs=in_specs,
            out_specs=row_spec),
        compiler_params=pltpu.CompilerParams(
            dimension_semantics=("parallel",),
            vmem_limit_bytes=_VMEM_LIMIT),
    )(*args)


def layer_norm(x, gamma, beta, eps=1e-12):
    return _layer_norm_impl(x, gamma, beta, eps)


def add_layer_norm(x, y, gamma, beta, eps=1e-12):
    """LayerNorm(x + y): the residual add is fused into the kernel."""
    return _layer_norm_impl(x, gamma, beta, eps, residual_in=y)


# ----------------------------------------------------------------------------
# Flash-style masked multi-head attention, reading the fused QKV tensor.
#   qkv: [B, S, 3H] (columns: Q heads | K heads | V heads), typically bf16
#   mask_bias: [B, 1, S] additive (0 keep / -1e9 pad)
#   output: [B, S, H] bf16, written as a lane-dense (tq, H) block per q tile
# Grid (B, S/tq, S/tk); heads are a static in-kernel loop so all slices are
# static and the per-(b,qi) output block stays resident across the kv axis.
# ----------------------------------------------------------------------------

def _flash_attn_kernel(q_ref, kv_ref, bias_ref, o_ref,
                       m_sc, l_sc, acc_sc, *, num_heads, head_dim, scale):
    ki = pl.program_id(2)
    H = num_heads * head_dim

    @pl.when(ki == 0)
    def _():
        m_sc[...] = jnp.full_like(m_sc, -jnp.inf)
        l_sc[...] = jnp.zeros_like(l_sc)
        acc_sc[...] = jnp.zeros_like(acc_sc)

    bias = bias_ref[...].astype(jnp.float32)              # (1, tk)

    for h in range(num_heads):                            # static unrolled loop
        q = q_ref[:, h * head_dim:(h + 1) * head_dim] * scale          # (tq, Dh)
        k = kv_ref[:, H + h * head_dim:H + (h + 1) * head_dim]         # (tk, Dh)
        v = kv_ref[:, 2 * H + h * head_dim:2 * H + (h + 1) * head_dim] # (tk, Dh)

        s = jax.lax.dot_general(q, k, (((1,), (1,)), ((), ())),
                                preferred_element_type=jnp.float32) + bias

        m_prev = m_sc[h]                                   # (tq, 1)
        m_new = jnp.maximum(m_prev, jnp.max(s, axis=-1, keepdims=True))
        alpha = jnp.exp(m_prev - m_new)
        p = jnp.exp(s - m_new)
        l_sc[h] = alpha * l_sc[h] + jnp.sum(p, axis=-1, keepdims=True)
        acc_sc[h] = alpha * acc_sc[h] + jnp.dot(p.astype(v.dtype), v,
                                                preferred_element_type=jnp.float32)
        m_sc[h] = m_new

    @pl.when(ki == pl.num_programs(2) - 1)
    def _():
        outs = []
        for h in range(num_heads):
            inv_l = pl.reciprocal(l_sc[h], approx=True)
            outs.append((acc_sc[h] * inv_l).astype(o_ref.dtype))
        o_ref[...] = jnp.concatenate(outs, axis=-1)        # lane-dense (tq, H) store


def flash_attention(qkv, mask_bias, num_heads, scale):
    # TODO(synk): the kv-row DMA fetches the unused Q columns of the 3H slab
    # (~1.5x K/V traffic); a dedicated KV-only view would remove that at the
    # cost of an extra XLA slice copy.
    B, S, threeH = qkv.shape
    H = threeH // 3
    Dh = H // num_heads
    tq = _tile(S, 256, 8)
    tk = _tile(S, 256, 128)
    grid = (B, S // tq, S // tk)
    kern = functools.partial(_flash_attn_kernel, num_heads=num_heads,
                             head_dim=Dh, scale=scale)

    return pl.pallas_call(
        kern,
        out_shape=jax.ShapeDtypeStruct((B, S, H), jnp.bfloat16),
        grid_spec=pltpu.PrefetchScalarGridSpec(
            num_scalar_prefetch=0,
            grid=grid,
            in_specs=[pl.BlockSpec((pl.Squeezed(), tq, threeH),
                                   lambda b, qi, ki: (b, qi, 0)),
                      pl.BlockSpec((pl.Squeezed(), tk, threeH),
                                   lambda b, qi, ki: (b, ki, 0)),
                      pl.BlockSpec((pl.Squeezed(), 1, tk),
                                   lambda b, qi, ki: (b, 0, ki))],
            out_specs=pl.BlockSpec((pl.Squeezed(), tq, H),
                                   lambda b, qi, ki: (b, qi, 0)),
            scratch_shapes=[pltpu.VMEM((num_heads, tq, 1), jnp.float32),
                            pltpu.VMEM((num_heads, tq, 1), jnp.float32),
                            pltpu.VMEM((num_heads, tq, Dh), jnp.float32)]),
        compiler_params=pltpu.CompilerParams(
            dimension_semantics=("parallel", "parallel", "arbitrary"),
            vmem_limit_bytes=_VMEM_LIMIT),
        cost_estimate=pl.CostEstimate(
            flops=4 * B * num_heads * S * S * Dh,
            transcendentals=B * num_heads * S * S,
            bytes_accessed=(qkv.dtype.itemsize * B * S * threeH * (1 + S // tq)
                            + 4 * B * S
                            + 2 * B * S * H)),
    )(qkv, qkv, mask_bias)


# ----------------------------------------------------------------------------
# SimCSE head: cosine-sim matrix + CE(labels=arange) + pairwise cosine pred
# ----------------------------------------------------------------------------

def _simcse_head_kernel(z1_ref, z2_ref, loss_ref, pred_ref, *, temp):
    z1 = z1_ref[...].astype(jnp.float32)
    z2 = z2_ref[...].astype(jnp.float32)
    eps = 1e-8
    n1 = jnp.maximum(jnp.sqrt(jnp.sum(z1 * z1, axis=-1, keepdims=True)), eps)
    n2 = jnp.maximum(jnp.sqrt(jnp.sum(z2 * z2, axis=-1, keepdims=True)), eps)
    z1n = z1 / n1
    z2n = z2 / n2

    # cosine-sim matrix / temp  -> [B, B]  (contract last dims, no transpose)
    sim = jax.lax.dot_general(z1n, z2n, (((1,), (1,)), ((), ())),
                              preferred_element_type=jnp.float32) / temp

    B = sim.shape[0]
    row = jax.lax.broadcasted_iota(jnp.int32, (B, B), 0)
    col = jax.lax.broadcasted_iota(jnp.int32, (B, B), 1)
    diag_mask = (row == col).astype(jnp.float32)

    # cross entropy with labels arange(B): mean_i( logsumexp(sim_i) - sim_ii )
    m = jnp.max(sim, axis=-1, keepdims=True)
    lse = jnp.log(jnp.sum(jnp.exp(sim - m), axis=-1, keepdims=True)) + m
    diag = jnp.sum(sim * diag_mask, axis=-1, keepdims=True)
    loss_ref[...] = jnp.mean(lse - diag).reshape(1, 1)

    # pred = elementwise cosine similarity of paired rows -> [B, 1]
    pred_ref[...] = jnp.sum(z1n * z2n, axis=-1, keepdims=True)


def simcse_head(z1_cls, z2_cls, temp):
    B, _ = z1_cls.shape
    kern = functools.partial(_simcse_head_kernel, temp=temp)
    vmem = pl.BlockSpec(memory_space=pltpu.MemorySpace.VMEM)
    loss, pred = pl.pallas_call(
        kern,
        out_shape=(jax.ShapeDtypeStruct((1, 1), jnp.float32),
                   jax.ShapeDtypeStruct((B, 1), jnp.float32)),
        in_specs=[vmem, vmem],
        out_specs=(vmem, vmem),
        compiler_params=pltpu.CompilerParams(vmem_limit_bytes=_VMEM_LIMIT),
    )(z1_cls, z2_cls)
    return loss[0, 0], pred[:, 0]


# ----------------------------------------------------------------------------
# BERT-style encoder built from the kernels above (glue in plain JAX)
# ----------------------------------------------------------------------------

def bert_layer(p, x, mask_bias):
    B, S, H = x.shape
    nH = p["num_heads"]
    Dh = H // nH
    x2d = x.reshape(B * S, H)

    # fused QKV projection, bf16 output feeds the attention MXU directly
    qkv = dense(x2d, p["wqkv"], p["bqkv"], out_dtype=jnp.bfloat16)   # [B*S, 3H]

    # attention reads [B, S, 3H] directly and writes [B, S, H]: no head
    # split / transpose round trips, lane-dense stores.
    ctx = flash_attention(qkv.reshape(B, S, 3 * H), mask_bias, nH,
                          scale=1.0 / (Dh ** 0.5))                   # [B, S, H] bf16

    attn_out = dense(ctx.reshape(B * S, H), p["wo"], p["bo"])
    x2d = add_layer_norm(x2d, attn_out, p["ln1_g"], p["ln1_b"])

    ffn_out = ffn(x2d, p["w1"], p["b1"], p["w2"], p["b2"])
    x2d = add_layer_norm(x2d, ffn_out, p["ln2_g"], p["ln2_b"])
    return x2d.reshape(B, S, H)


def bert_encode(params, input_ids, attention_mask, token_type_ids):
    B, S = input_ids.shape
    H = params["word_emb"].shape[1]
    pos_ids = jnp.arange(S)
    x = (params["word_emb"][input_ids]
         + params["pos_emb"][pos_ids][None, :, :]
         + params["type_emb"][token_type_ids])
    x = layer_norm(x.reshape(B * S, H),
                   params["emb_ln_g"], params["emb_ln_b"]).reshape(B, S, H)
    # TODO(synk): dropout omitted (inference-style forward).
    mask_bias = (1.0 - attention_mask.astype(jnp.float32))[:, None, :] * (-1e9)
    for layer in params["layers"]:
        x = bert_layer(layer, x, mask_bias)
    return x  # last_hidden_state [B, S, H]


def simcse_forward(params, input_ids, attention_mask, token_type_ids, temp=0.05):
    if input_ids.shape[-1] % 2 != 0:
        raise Exception("input_ids shape couldn't divide 2")
    S = input_ids.shape[-1] // 2
    z1_ids, z2_ids = input_ids[:, :S], input_ids[:, S:]
    z1_h = bert_encode(params, z1_ids, attention_mask[:, :S],
                       token_type_ids[:, :S])
    z2_h = bert_encode(params, z2_ids, attention_mask[:, S:],
                       token_type_ids[:, S:])
    z1_cls, z2_cls = z1_h[:, 0], z2_h[:, 0]
    loss, pred = simcse_head(z1_cls, z2_cls, temp)
    return {"loss": loss, "pred": pred}


# ----------------------------------------------------------------------------
# Deterministic parameter init (synthetic "pretrained" weights).
# Matmul weights stored bf16 (f32 accumulation in-kernel); embeddings, biases
# and LN params stay f32.
# ----------------------------------------------------------------------------

def init_params(key, vocab=64, hidden=32, num_layers=2, num_heads=2,
                intermediate=64, max_pos=32, type_vocab=2):
    keys = iter(jax.random.split(key, 128))

    def nrm(shape, dtype=jnp.float32):
        return (0.02 * jax.random.normal(next(keys), shape)).astype(dtype)

    bf16 = jnp.bfloat16
    params = {
        "word_emb": nrm((vocab, hidden)),
        "pos_emb": nrm((max_pos, hidden)),
        "type_emb": nrm((type_vocab, hidden)),
        "emb_ln_g": jnp.ones((hidden,), jnp.float32),
        "emb_ln_b": jnp.zeros((hidden,), jnp.float32),
        "layers": [],
    }
    for _ in range(num_layers):
        wq = nrm((hidden, hidden), bf16)
        wk = nrm((hidden, hidden), bf16)
        wv = nrm((hidden, hidden), bf16)
        params["layers"].append({
            "num_heads": num_heads,
            "wqkv": jnp.concatenate([wq, wk, wv], axis=1),        # [H, 3H] bf16
            "bqkv": jnp.zeros((3 * hidden,), jnp.float32),
            "wo": nrm((hidden, hidden), bf16),
            "bo": jnp.zeros((hidden,), jnp.float32),
            "ln1_g": jnp.ones((hidden,), jnp.float32),
            "ln1_b": jnp.zeros((hidden,), jnp.float32),
            "w1": nrm((hidden, intermediate), bf16),
            "b1": jnp.zeros((intermediate,), jnp.float32),
            "w2": nrm((intermediate, hidden), bf16),
            "b2": jnp.zeros((hidden,), jnp.float32),
            "ln2_g": jnp.ones((hidden,), jnp.float32),
            "ln2_b": jnp.zeros((hidden,), jnp.float32),
        })
    return params


if __name__ == "__main__":
    key = jax.random.PRNGKey(0)
    k_param, k_ids, k_types = jax.random.split(key, 3)

    B, total_seq = 2, 16          # forward splits this into two halves of seq=8
    vocab = 64

    params = init_params(k_param, vocab=vocab, hidden=32, num_layers=2,
                         num_heads=2, intermediate=64, max_pos=32)

    input_ids = jax.random.randint(k_ids, (B, total_seq), 0, vocab,
                                   dtype=jnp.int32)
    attention_mask = jnp.ones((B, total_seq), dtype=jnp.int32)
    token_type_ids = jax.random.randint(k_types, (B, total_seq), 0, 2,
                                        dtype=jnp.int32)

    out = simcse_forward(params, input_ids, attention_mask, token_type_ids,
                         temp=0.05)
    jax.block_until_ready(out["loss"])
    jax.block_until_ready(out["pred"])

    assert out["loss"].shape == ()
    assert out["pred"].shape == (B,)
    assert bool(jnp.isfinite(out["loss"]))
    print("KERNEL_OK")
</pallas_src>

<mosaic_0001>
module attributes {stable_mosaic.version = 11 : i64} {
  func.func @_ln_kernel(%arg0: i32, %arg1: memref<8x32xf32, #tpu.memory_space<vmem>>, %arg2: memref<1x32xf32, #tpu.memory_space<vmem>>, %arg3: memref<1x32xf32, #tpu.memory_space<vmem>>, %arg4: memref<8x32xf32, #tpu.memory_space<vmem>>) attributes {dimension_semantics = [#tpu.dimension_semantics<parallel>], iteration_bounds = array<i64: 2>, scalar_prefetch = 0 : i64, scratch_operands = 0 : i64, tpu.core_type = #tpu.core_type<tc>, window_params = [{transform_indices = @transform_0, window_bounds = array<i64: 8, 32>}, {pipeline_mode = #tpu.pipeline_mode<synchronous>, transform_indices = @transform_1, window_bounds = array<i64: 1, 32>}, {pipeline_mode = #tpu.pipeline_mode<synchronous>, transform_indices = @transform_2, window_bounds = array<i64: 1, 32>}, {transform_indices = @transform_3, window_bounds = array<i64: 8, 32>}]} {
    %c0 = arith.constant 0 : index
    %c0_0 = arith.constant 0 : index
    %0 = vector.load %arg1[%c0, %c0_0] : memref<8x32xf32, #tpu.memory_space<vmem>>, vector<8x32xf32>
    %cst = arith.constant dense<0.000000e+00> : vector<8xf32>
    %1 = vector.multi_reduction <add>, %0, %cst [1] : vector<8x32xf32> to vector<8xf32>
    %2 = vector.shape_cast %1 : vector<8xf32> to vector<8x1xf32>
    %cst_1 = arith.constant 3.200000e+01 : f32
    %3 = vector.broadcast %cst_1 : f32 to vector<8x1xf32>
    %4 = arith.divf %2, %3 : vector<8x1xf32>
    %5 = vector.broadcast %4 : vector<8x1xf32> to vector<8x32xf32>
    %6 = arith.subf %0, %5 : vector<8x32xf32>
    %7 = arith.mulf %6, %6 : vector<8x32xf32>
    %cst_2 = arith.constant dense<0.000000e+00> : vector<8xf32>
    %8 = vector.multi_reduction <add>, %7, %cst_2 [1] : vector<8x32xf32> to vector<8xf32>
    %9 = vector.shape_cast %8 : vector<8xf32> to vector<8x1xf32>
    %cst_3 = arith.constant 3.200000e+01 : f32
    %10 = vector.broadcast %cst_3 : f32 to vector<8x1xf32>
    %11 = arith.divf %9, %10 : vector<8x1xf32>
    %cst_4 = arith.constant 9.99999996E-13 : f32
    %12 = vector.broadcast %cst_4 : f32 to vector<8x1xf32>
    %13 = arith.addf %11, %12 : vector<8x1xf32>
    %14 = math.rsqrt %13 : vector<8x1xf32>
    %15 = vector.broadcast %14 : vector<8x1xf32> to vector<8x32xf32>
    %16 = arith.mulf %6, %15 : vector<8x32xf32>
    %c0_5 = arith.constant 0 : index
    %c0_6 = arith.constant 0 : index
    %17 = vector.load %arg2[%c0_5, %c0_6] : memref<1x32xf32, #tpu.memory_space<vmem>>, vector<1x32xf32>
    %18 = vector.broadcast %17 : vector<1x32xf32> to vector<8x32xf32>
    %19 = arith.mulf %16, %18 : vector<8x32xf32>
    %c0_7 = arith.constant 0 : index
    %c0_8 = arith.constant 0 : index
    %20 = vector.load %arg3[%c0_7, %c0_8] : memref<1x32xf32, #tpu.memory_space<vmem>>, vector<1x32xf32>
    %21 = vector.broadcast %20 : vector<1x32xf32> to vector<8x32xf32>
    %22 = arith.addf %19, %21 : vector<8x32xf32>
    %c0_9 = arith.constant 0 : index
    %c0_10 = arith.constant 0 : index
    %23 = vector.load %arg4[%c0_9, %c0_10] : memref<8x32xf32, #tpu.memory_space<vmem>>, vector<8x32xf32>
    tpu.vector_store %arg4[%c0_9, %c0_10], %22 {strides = array<i32>} : memref<8x32xf32, #tpu.memory_space<vmem>>, vector<8x32xf32>,
    return
  }
  func.func @transform_0(%arg0: i32) -> (i32, i32) {
    %c0_i32 = arith.constant 0 : i32
    %c0_i32_0 = arith.constant 0 : i32
    return %arg0, %c0_i32 : i32, i32
  }
  func.func @transform_1(%arg0: i32) -> (i32, i32) {
    %c0_i32 = arith.constant 0 : i32
    %c0_i32_0 = arith.constant 0 : i32
    %c0_i32_1 = arith.constant 0 : i32
    return %c0_i32, %c0_i32_0 : i32, i32
  }
  func.func @transform_2(%arg0: i32) -> (i32, i32) {
    %c0_i32 = arith.constant 0 : i32
    %c0_i32_0 = arith.constant 0 : i32
    %c0_i32_1 = arith.constant 0 : i32
    return %c0_i32, %c0_i32_0 : i32, i32
  }
  func.func @transform_3(%arg0: i32) -> (i32, i32) {
    %c0_i32 = arith.constant 0 : i32
    %c0_i32_0 = arith.constant 0 : i32
    return %arg0, %c0_i32 : i32, i32
  }
}

</mosaic_0001>

<llo_original>
// kernel: tpu_custom_call.1
$region0: #{tpu_custom_call.1}
  #allocation0 [shape = 'u32[]', space=smem, size = 0x4, offset = 0x4, fixed_abs, tag = 'smem constant byte address 0x4 - core index']
  #allocation1 [shape = 'u32[72,128]{1,0:T(1,128)}', space=vmem, size = 0x9000, scoped, tag = 'internal scratch']
  %s0 = inlined_call_operand.hbm [shape: f32[16,32], index: 0, kind: input, shape index: {}]
  %s1 = inlined_call_operand.hbm [shape: f32[1,32], index: 1, kind: input, shape index: {}]
  %s2 = inlined_call_operand.vmem [shape: f32[1,32], index: 2, kind: input, shape index: {}]
  %s3 = inlined_call_operand.hbm [shape: f32[16,32], index: 3, kind: output, shape index: {}]
  %s4 = sld [smem:[#allocation0]]
  $region53: #{tpu_custom_call.1} parent=0
    _
  %s6 = ssub.s32 1, %s4
  %s7 = scalar_select 0, %s6, %s4
  $region1: #{tpu_custom_call.1} parent=0
    #allocation2 [shape = 'u8[8192]{0}', space=vmem, size = 0x2000, scoped, tag = 'input window, operand 0']
    #allocation3 [shape = 's32[2]{0}', space=sflag, size = 0x8, scoped, tag = 'scoped memory for tpu_custom_call.1']
    #allocation4 [shape = 's32[2]{0}', space=sflag, size = 0x8, scoped, tag = 'scoped memory for tpu_custom_call.1']
    #allocation5 [shape = 'u8[512]{0}', space=vmem, size = 0x400, scoped, tag = 'input window, operand 1, single buffered']
    #allocation6 [shape = 's32[1]{0}', space=sflag, size = 0x4, scoped, tag = 'scoped memory for tpu_custom_call.1']
    #allocation7 [shape = 'u8[8192]{0}', space=vmem, size = 0x2000, scoped, tag = 'output window, operand 0']
    %8 = vsyncpa [#allocation3], 0
    %s9 = scalar_lea.sflag [#allocation3], 1
    %10 = vsyncpa %s9, 0
    %11 = vsyncpa [#allocation6], 0
    %12 = vsyncpa [#allocation4], 0
    %s13 = scalar_lea.sflag [#allocation4], 1
    %14 = vsyncpa %s13, 0
    loop: start=0, step=1, limit=4
    $region2: #{tpu_custom_call.1} parent=1 // loop_pre_header
      _
    $region3: #{tpu_custom_call.1} parent=1 // loop_header
      %s16 = sphi 0, %s20
      %p17 = scmp.ge.s32.totalorder %s16, 4
      %s26 = sphi 0, %s28
      %s29 = sphi 0, %s26
      %s30 = sphi 0, %s29
      %s46 = sphi 0, %s30
      %s50 = sphi 0, %s50
      %s52 = sphi 0, %s50
      %s53 = sphi 0, %s52
      %s67 = sphi 0, %s53
      %s71 = sphi 0, %s71
      %s73 = sphi 0, %s71
      %s74 = sphi 0, %s73
      %s88 = sphi 0, %s74
      %s94 = sphi 0, %s96
      %s97 = sphi 0, %s94
      %s98 = sphi 0, %s97
      %s114 = sphi 0, %s98
    $region4: #{tpu_custom_call.1} parent=1 // loop_header_branch
      %19 = sbr.rel (%p17) target = $region8
    $region5: #{tpu_custom_call.1} parent=1 // loop_body
      %s21 = ssub.s32 %s16, 1
      %s22 = ssub.s32 %s16, 2
      %s23 = sadd.s32 %s16, 1
      %s24 = ssub.s32 %s16, %s23
      %p25 = scmp.eq.s32.totalorder %s24, 0
      %s27 = sadd.s32 %s26, 1
      %s28 = scalar_select %p25, %s26, %s27
      %p31 = pneg %p25
      %p32 = scmp.eq.s32.totalorder %s16, 1
      %p33 = por %p31, %p32
      %p34 = scmp.ne.s32.totalorder %s26, %s29
      %p35 = scmp.eq.s32.totalorder %s16, 0
      %p36 = por %p34, %p35
      %p37 = scmp.ne.s32.totalorder %s26, %s29
      %p38 = scmp.eq.s32.totalorder %s21, 1
      %p39 = por %p37, %p38
      %p40 = scmp.ne.s32.totalorder %s29, %s30
      %p41 = scmp.eq.s32.totalorder %s21, 0
      %p42 = por %p40, %p41
      %p43 = scmp.ne.s32.totalorder %s29, %s30
      %p44 = scmp.eq.s32.totalorder %s22, 1
      %p45 = por %p43, %p44
      %p47 = scmp.ne.s32.totalorder %s30, %s46
      %p48 = scmp.eq.s32.totalorder %s22, 0
      %p49 = por %p47, %p48
      %s51 = sadd.s32 %s50, 1
      %p54 = scmp.eq.s32.totalorder %s16, 1
      %p55 = scmp.ne.s32.totalorder %s50, %s52
      %p56 = scmp.eq.s32.totalorder %s16, 0
      %p57 = por %p55, %p56
      %p58 = scmp.ne.s32.totalorder %s50, %s52
      %p59 = scmp.eq.s32.totalorder %s21, 1
      %p60 = por %p58, %p59
      %p61 = scmp.ne.s32.totalorder %s52, %s53
      %p62 = scmp.eq.s32.totalorder %s21, 0
      %p63 = por %p61, %p62
      %p64 = scmp.ne.s32.totalorder %s52, %s53
      %p65 = scmp.eq.s32.totalorder %s22, 1
      %p66 = por %p64, %p65
      %p68 = scmp.ne.s32.totalorder %s53, %s67
      %p69 = scmp.eq.s32.totalorder %s22, 0
      %p70 = por %p68, %p69
      %s72 = sadd.s32 %s71, 1
      %p75 = scmp.eq.s32.totalorder %s16, 1
      %p76 = scmp.ne.s32.totalorder %s71, %s73
      %p77 = scmp.eq.s32.totalorder %s16, 0
      %p78 = por %p76, %p77
      %p79 = scmp.ne.s32.totalorder %s71, %s73
      %p80 = scmp.eq.s32.totalorder %s21, 1
      %p81 = por %p79, %p80
      %p82 = scmp.ne.s32.totalorder %s73, %s74
      %p83 = scmp.eq.s32.totalorder %s21, 0
      %p84 = por %p82, %p83
      %p85 = scmp.ne.s32.totalorder %s73, %s74
      %p86 = scmp.eq.s32.totalorder %s22, 1
      %p87 = por %p85, %p86
      %p89 = scmp.ne.s32.totalorder %s74, %s88
      %p90 = scmp.eq.s32.totalorder %s22, 0
      %p91 = por %p89, %p90
      %s92 = ssub.s32 %s16, %s23
      %p93 = scmp.eq.s32.totalorder %s92, 0
      %s95 = sadd.s32 %s94, 1
      %s96 = scalar_select %p93, %s94, %s95
      %p99 = pneg %p93
      %p100 = scmp.eq.s32.totalorder %s16, 1
      %p101 = por %p99, %p100
      %p102 = scmp.ne.s32.totalorder %s94, %s97
      %p103 = scmp.eq.s32.totalorder %s16, 0
      %p104 = por %p102, %p103
      %p105 = scmp.ne.s32.totalorder %s94, %s97
      %p106 = scmp.eq.s32.totalorder %s21, 1
      %p107 = por %p105, %p106
      %p108 = scmp.ne.s32.totalorder %s97, %s98
      %p109 = scmp.eq.s32.totalorder %s21, 0
      %p110 = por %p108, %p109
      %p111 = scmp.ne.s32.totalorder %s97, %s98
      %p112 = scmp.eq.s32.totalorder %s22, 1
      %p113 = por %p111, %p112
      %p115 = scmp.ne.s32.totalorder %s98, %s114
      %p116 = scmp.eq.s32.totalorder %s22, 0
      %p117 = por %p115, %p116
      %p118 = scmp.le.s32.totalorder 1, %s16
      %p119 = scmp.lt.s32.totalorder %s16, 3
      %p120 = pnand %p118, %p119
      %p121 = pneg %p120
      // Predicated region
      $region9: #{tpu_custom_call.1} parent=5 // pred_check
        _
      $region10: #{tpu_custom_call.1} parent=5 // pred_check_branch
        %123 = sbr.rel (%p120) target = $region12
      $region11: #{tpu_custom_call.1} parent=5 // pred_region
        %s124 = ssub.s32 %s16, 1
        // Predicated region
        $region13: #{tpu_custom_call.1} parent=11 // pred_check
          %p125 = pneg %p63
        $region14: #{tpu_custom_call.1} parent=11 // pred_check_branch
          %127 = sbr.rel (%p125) target = $region16
        $region15: #{tpu_custom_call.1} parent=11 // pred_region
          %129 = vsyncadd [#allocation6], 0
          %s131 = sshll.u32 %s1, 4
          %s132 = int_to_ptr.hbm [resolvable:$true] %s131
          %s133 = sshll.u32 [#allocation5], 4
          %s134 = int_to_ptr.vmem [resolvable:$true] %s133
          %136 = dma.hbm_to_vmem [thread:$0]  %s132, 16, %s134, [#allocation6]
        $region16: #{tpu_custom_call.1} parent=11 // pred_fallthru
          _
        // Predicated region
        $region17: #{tpu_custom_call.1} parent=11 // pred_check
          %p137 = pneg %p84
        $region18: #{tpu_custom_call.1} parent=11 // pred_check_branch
          %139 = sbr.rel (%p137) target = $region20
        $region19: #{tpu_custom_call.1} parent=11 // pred_region
          _
        $region20: #{tpu_custom_call.1} parent=11 // pred_fallthru
          _
      $region12: #{tpu_custom_call.1} parent=5 // pred_fallthru
        _
      %p140 = scmp.lt.s32.totalorder %s16, 2
      // Predicated region
      $region21: #{tpu_custom_call.1} parent=5 // pred_check
        %p141 = pneg %p140
      $region22: #{tpu_custom_call.1} parent=5 // pred_check_branch
        %143 = sbr.rel (%p141) target = $region24
      $region23: #{tpu_custom_call.1} parent=5 // pred_region
        // Predicated region
        $region25: #{tpu_custom_call.1} parent=23 // pred_check
          %p144 = pneg %p36
        $region26: #{tpu_custom_call.1} parent=23 // pred_check_branch
          %146 = sbr.rel (%p144) target = $region28
        $region27: #{tpu_custom_call.1} parent=23 // pred_region
          %s147 = sand.u32 %s26, 1
          %s148 = scalar_lea.sflag [#allocation3], %s147
          %s149 = sand.u32 %s26, 1
          %s150 = smul.addr %s149, 8
          %s151 = scalar_lea.vmem [#allocation2], %s150
          %153 = vsyncadd %s148, 0
          %s154 = smul.addr %s16, 8
          %s155 = scalar_lea.hbm %s0, %s154
          %s157 = sshll.u32 %s155, 4
          %s158 = int_to_ptr.hbm [resolvable:$true] %s157
          %s159 = sshll.u32 %s151, 4
          %s160 = int_to_ptr.vmem [resolvable:$true] %s159
          %162 = dma.hbm_to_vmem [thread:$0]  %s158, 128, %s160, %s148
        $region28: #{tpu_custom_call.1} parent=23 // pred_fallthru
          _
      $region24: #{tpu_custom_call.1} parent=5 // pred_fallthru
        _
      %p163 = scmp.le.s32.totalorder 1, %s16
      %p164 = scmp.lt.s32.totalorder %s16, 3
      %p165 = pnand %p163, %p164
      %p166 = pneg %p165
      // Predicated region
      $region29: #{tpu_custom_call.1} parent=5 // pred_check
        _
      $region30: #{tpu_custom_call.1} parent=5 // pred_check_branch
        %168 = sbr.rel (%p165) target = $region32
      $region31: #{tpu_custom_call.1} parent=5 // pred_region
        %s169 = ssub.s32 %s16, 1
        %s170 = sand.u32 %s29, 1
        %s171 = scalar_lea.sflag [#allocation3], %s170
        %s172 = sand.u32 %s29, 1
        %s173 = smul.addr %s172, 8
        %s174 = scalar_lea.vmem [#allocation2], %s173
        // Predicated region
        $region33: #{tpu_custom_call.1} parent=31 // pred_check
          %p175 = pneg %p42
        $region34: #{tpu_custom_call.1} parent=31 // pred_check_branch
          %177 = sbr.rel (%p175) target = $region36
        $region35: #{tpu_custom_call.1} parent=31 // pred_region
          %179 = dma.done %s171, 128
        $region36: #{tpu_custom_call.1} parent=31 // pred_fallthru
          _
        // Predicated region
        $region37: #{tpu_custom_call.1} parent=31 // pred_check
          %p180 = pneg %p63
        $region38: #{tpu_custom_call.1} parent=31 // pred_check_branch
          %182 = sbr.rel (%p180) target = $region40
        $region39: #{tpu_custom_call.1} parent=31 // pred_region
          %184 = dma.done [#allocation6], 16
        $region40: #{tpu_custom_call.1} parent=31 // pred_fallthru
          _
        %s185 = sand.u32 %s29, 1
        %s186 = scalar_lea.sflag [#allocation3], %s185
        %s187 = sand.u32 %s29, 1
        %s188 = smul.addr %s187, 8
        %s189 = scalar_lea.vmem [#allocation2], %s188
        %p190 = pneg %p42
        %p191 = pneg %p39
        %p192 = pneg %p63
        %p193 = pneg %p60
        %p194 = pneg %p84
        %p195 = pneg %p81
        %p196 = pneg %p110
        %p197 = pneg %p107
        %s198 = sand.u32 %s97, 1
        %s199 = scalar_lea.sflag [#allocation4], %s198
        %s200 = sand.u32 %s97, 1
        %s201 = smul.addr %s200, 8
        %s202 = scalar_lea.vmem [#allocation7], %s201
        %v203 = vld [vmem:[%s174] sm:$0xff]
        %vm204 = vcmask 261120
        %v205 = vsel %vm204, %v203, 0.0
        %206 = vadd.xlane.f32.xlu0 %v205
        %v207 = vpop.xlane.xlu0 %206
        %v208 = vrcp.pop 32.0
        %v209 = vmul.f32 32.0, %v208
        %v210 = vsub.f32 1.0, %v209
        %v211 = vmul.f32 %v208, %v210
        %v212 = vadd.f32 %v208, %v211
        %vm213 = vweird.f32 %v208
        %v214 = vsel %vm213, %v208, %v212
        %v215 = vmul.f32 %v207, %v214
        %v216 = vsub.f32 %v203, %v215
        %v217 = vmul.f32 %v216, %v216
        %v218 = vsel %vm204, %v217, 0.0
        %219 = vadd.xlane.f32.xlu0 %v218
        %v220 = vpop.xlane.xlu0 %219
        %v221 = vmul.f32 %v220, %v214
        %v222 = vadd.f32 %v221, 1e-12
        %v223 = vrsqrt.pop %v222
        %v224 = vmul.f32 %v223, %v222
        %v225 = vmul.f32 %v224, %v223
        %v226 = vmul.f32 0.5, %v225
        %v227 = vsub.f32 1.5, %v226
        %v228 = vmul.f32 %v223, %v227
        %vm229 = vweird.f32 %v222
        %vm230 = vweird.f32 %v223
        %vm231 = vmor %vm229, %vm230
        %v232 = vsel %vm231, %v223, %v228
        %v233 = vmul.f32 %v216, %v232
        %v234 = vld [vmem:[#allocation5] sm:$0x1]
        %v236 = vperm.slane %v234, 0
        %v238 = vmul.f32 %v233, %v236
        %v239 = vld [vmem:[%s2] sm:$0x1]
        %v241 = vperm.slane %v239, 0
        %v243 = vadd.f32 %v238, %v241
        %244 = vst.msk [vmem:[%s202] sm:$0xff] %vm204, %v243
        %s245 = sand.u32 %s97, 1
        %s246 = scalar_lea.sflag [#allocation4], %s245
        %s247 = sand.u32 %s97, 1
        %s248 = smul.addr %s247, 8
        %s249 = scalar_lea.vmem [#allocation7], %s248
        // Predicated region
        $region41: #{tpu_custom_call.1} parent=31 // pred_check
          %p250 = pneg %p107
        $region42: #{tpu_custom_call.1} parent=31 // pred_check_branch
          %252 = sbr.rel (%p250) target = $region44
        $region43: #{tpu_custom_call.1} parent=31 // pred_region
          %254 = vsyncadd %s246, 0
          %s255 = smul.addr %s21, 8
          %s256 = scalar_lea.hbm %s3, %s255
          %s258 = sshll.u32 %s249, 4
          %s259 = int_to_ptr.vmem [resolvable:$true] %s258
          %s260 = sshll.u32 %s256, 4
          %s261 = int_to_ptr.hbm [resolvable:$true] %s260
          %263 = dma.vmem_to_hbm [thread:$0]  %s259, 128, %s261, %s246
        $region44: #{tpu_custom_call.1} parent=31 // pred_fallthru
          _
      $region32: #{tpu_custom_call.1} parent=5 // pred_fallthru
        _
      %p264 = scmp.le.s32.totalorder 2, %s16
      // Predicated region
      $region45: #{tpu_custom_call.1} parent=5 // pred_check
        %p265 = pneg %p264
      $region46: #{tpu_custom_call.1} parent=5 // pred_check_branch
        %267 = sbr.rel (%p265) target = $region48
      $region47: #{tpu_custom_call.1} parent=5 // pred_region
        %s268 = ssub.s32 %s16, 2
        // Predicated region
        $region49: #{tpu_custom_call.1} parent=47 // pred_check
          %p269 = pneg %p113
        $region50: #{tpu_custom_call.1} parent=47 // pred_check_branch
          %271 = sbr.rel (%p269) target = $region52
        $region51: #{tpu_custom_call.1} parent=47 // pred_region
          %s272 = sand.u32 %s98, 1
          %s273 = scalar_lea.sflag [#allocation4], %s272
          %s274 = sand.u32 %s98, 1
          %s275 = smul.addr %s274, 8
          %s276 = scalar_lea.vmem [#allocation7], %s275
          %278 = dma.done %s273, 128
        $region52: #{tpu_custom_call.1} parent=47 // pred_fallthru
          _
      $region48: #{tpu_custom_call.1} parent=5 // pred_fallthru
        _
    $region6: #{tpu_custom_call.1} parent=1 // loop_footer
      %s20 = sadd.s32 1, %s16
    $region7: #{tpu_custom_call.1} parent=1 // loop_footer_branch
      %15 = sbr.rel target = $region3
    $region8: #{tpu_custom_call.1} parent=1 // loop_exit
      _
    %279 = vsyncpa [#allocation3], 1
    %s280 = scalar_lea.sflag [#allocation3], 1
    %281 = vsyncpa %s280, 1
    %282 = vsyncpa [#allocation6], 1
    %283 = vsyncpa [#allocation4], 1
    %s284 = scalar_lea.sflag [#allocation4], 1
    %285 = vsyncpa %s284, 1

</llo_original>
